<compile_context>
chip_gen: v5e
topology: v5e:2x2
jax: 0.10.0
libtpu: 0.0.40
codegen_flags: <defaults>
</compile_context>

<pallas_src>
import jax
import jax.numpy as jnp
from jax import lax
from jax.experimental import pallas as pl
from jax.experimental.pallas import tpu as pltpu


def lstm_lm_kernel(embeds_ref, wih_t_ref, whh_t_ref, b_ref,
                   wlin_t_ref, blin_ref, out_ref, lstm_out_ref):
    """LSTM recurrence + linear projection + log_softmax, all in VMEM."""
    T, E = embeds_ref.shape
    H = whh_t_ref.shape[0]
    G = 4 * H

    # ---- Hoisted input projection + bias: one (T, E) @ (E, 4H) matmul. ----
    gates_x = (jnp.dot(embeds_ref[...], wih_t_ref[...],
                       preferred_element_type=jnp.float32)
               + b_ref[...])                                  # (T, 4H)

    # Lane mask selecting the "g" gate block (PyTorch order [i, f, g, o]).
    lane = lax.broadcasted_iota(jnp.int32, (1, G), 1)
    is_g = (lane >= 2 * H) & (lane < 3 * H)
    # Pre-scale: sigmoid lanes (i, f, o) get x/2 so a single tanh covers all gates.
    scale = jnp.where(is_g, 1.0, 0.5).astype(jnp.float32)     # (1, 4H)

    whh_t = whh_t_ref[...]                                    # keep resident (H, 4H)

    h = jnp.zeros((1, H), jnp.float32)
    c = jnp.zeros((1, H), jnp.float32)

    # Static unroll: T is small and known at trace time.
    for t in range(T):
        gates = gates_x[t:t + 1, :] + jnp.dot(
            h, whh_t, preferred_element_type=jnp.float32)     # (1, 4H)
        # One full-vreg EUP push: tanh over all four gate blocks.
        tt = jnp.tanh(gates * scale)
        # sigmoid(x) = 0.5*(1 + tanh(x/2)) for i/f/o lanes; raw tanh for g lanes.
        vals = jnp.where(is_g, tt, 0.5 * (1.0 + tt))          # (1, 4H)
        i_g = vals[:, 0 * H:1 * H]
        f_g = vals[:, 1 * H:2 * H]
        g_g = vals[:, 2 * H:3 * H]
        o_g = vals[:, 3 * H:4 * H]
        c = f_g * c + i_g * g_g
        h = o_g * jnp.tanh(c)
        lstm_out_ref[t:t + 1, :] = h

    # ---- Final projection: (T, H) @ (H, V_pad) + bias, then log_softmax. ----
    logits = (jnp.dot(lstm_out_ref[...], wlin_t_ref[...],
                      preferred_element_type=jnp.float32)
              + blin_ref[...])                                # (T, V_pad)
    m = jnp.max(logits, axis=1, keepdims=True)
    lse = jnp.log(jnp.sum(jnp.exp(logits - m), axis=1, keepdims=True)) + m
    out_ref[...] = logits - lse


def init_params(key, vocab_size, embedding_dim, hidden_dim):
    """Deterministic parameter init mirroring the PyTorch module's shapes."""
    ks = jax.random.split(key, 7)
    k = 1.0 / jnp.sqrt(hidden_dim)
    u = lambda kk, shape: jax.random.uniform(kk, shape, jnp.float32, -k, k)
    return {
        "embedding": jax.random.normal(ks[0], (vocab_size, embedding_dim),
                                       jnp.float32),
        "w_ih": u(ks[1], (4 * hidden_dim, embedding_dim)),    # PyTorch layout
        "w_hh": u(ks[2], (4 * hidden_dim, hidden_dim)),
        "b_ih": u(ks[3], (4 * hidden_dim,)),
        "b_hh": u(ks[4], (4 * hidden_dim,)),
        # PyTorch module: Linear(in_features=embedding_dim, out=vocab_size);
        # only valid because embedding_dim == hidden_dim in this model.
        "w_lin": u(ks[5], (vocab_size, embedding_dim)),       # (V, E)
        "b_lin": u(ks[6], (vocab_size,)),
    }


def lstm_language_model(sentence, params):
    """Forward pass equivalent to LSTMLanguageModel.forward (batch=1, zero h0/c0)."""
    embeds = jnp.take(params["embedding"], sentence, axis=0)  # (T, E)  glue gather
    T, E = embeds.shape
    H = params["w_hh"].shape[1]
    V = params["w_lin"].shape[0]
    # The PyTorch module feeds hidden states into Linear(in_features=embedding_dim);
    # this only makes sense when E == H (as in the spec, both 32).
    assert E == H, "LSTMLanguageModel requires embedding_dim == hidden_dim"

    wih_t = params["w_ih"].T                                  # (E, 4H)
    whh_t = params["w_hh"].T                                  # (H, 4H)
    bias = (params["b_ih"] + params["b_hh"]).reshape(1, 4 * H)

    # Lane-dense output: pad vocab to a multiple of 128. Padded logits get a
    # huge negative bias so they contribute 0 to the softmax denominator.
    Vp = ((V + 127) // 128) * 128
    wlin_t = params["w_lin"].T                                # (H, V)
    wlin_t_p = jnp.zeros((H, Vp), jnp.float32).at[:, :V].set(wlin_t)
    blin_p = jnp.full((1, Vp), -1e30, jnp.float32).at[0, :V].set(params["b_lin"])

    vmem = pl.BlockSpec(memory_space=pltpu.MemorySpace.VMEM)
    out_padded = pl.pallas_call(
        lstm_lm_kernel,
        out_shape=jax.ShapeDtypeStruct((T, Vp), jnp.float32),
        in_specs=[vmem] * 6,
        out_specs=vmem,
        scratch_shapes=[pltpu.VMEM((T, H), jnp.float32)],
    )(embeds, wih_t, whh_t, bias, wlin_t_p, blin_p)
    return out_padded[:, :V]


def reference_forward(sentence, params):
    """Pure-JAX reference for validation."""
    embeds = jnp.take(params["embedding"], sentence, axis=0)
    H = params["w_hh"].shape[1]
    b = params["b_ih"] + params["b_hh"]

    def step(carry, x_t):
        h, c = carry
        gates = x_t @ params["w_ih"].T + h @ params["w_hh"].T + b
        i = jax.nn.sigmoid(gates[0 * H:1 * H])
        f = jax.nn.sigmoid(gates[1 * H:2 * H])
        g = jnp.tanh(gates[2 * H:3 * H])
        o = jax.nn.sigmoid(gates[3 * H:4 * H])
        c_new = f * c + i * g
        h_new = o * jnp.tanh(c_new)
        return (h_new, c_new), h_new

    h0 = jnp.zeros((H,), jnp.float32)
    c0 = jnp.zeros((H,), jnp.float32)
    _, hs = lax.scan(step, (h0, c0), embeds)
    logits = hs @ params["w_lin"].T + params["b_lin"]
    return jax.nn.log_softmax(logits, axis=1)


if __name__ == "__main__":
    vocab_size = 64
    embedding_dim = 32
    hidden_dim = 32
    seq_len = 8

    key = jax.random.PRNGKey(0)
    k_params, k_tokens = jax.random.split(key)
    params = init_params(k_params, vocab_size, embedding_dim, hidden_dim)
    sentence = jax.random.randint(k_tokens, (seq_len,), 0, vocab_size,
                                  dtype=jnp.int32)

    out = lstm_language_model(sentence, params)
    out = jax.block_until_ready(out)

    ref = reference_forward(sentence, params)
    assert out.shape == (seq_len, vocab_size)
    assert jnp.allclose(out, ref, atol=1e-4, rtol=1e-4), "mismatch vs reference"

    print("KERNEL_OK")
</pallas_src>

<mosaic_0001>
module attributes {stable_mosaic.version = 11 : i64} {
  func.func @lstm_lm_kernel(%arg0: memref<8x32xf32, #tpu.memory_space<vmem>>, %arg1: memref<32x128xf32, #tpu.memory_space<vmem>>, %arg2: memref<32x128xf32, #tpu.memory_space<vmem>>, %arg3: memref<1x128xf32, #tpu.memory_space<vmem>>, %arg4: memref<32x128xf32, #tpu.memory_space<vmem>>, %arg5: memref<1x128xf32, #tpu.memory_space<vmem>>, %arg6: memref<8x128xf32, #tpu.memory_space<vmem>>, %arg7: memref<8x32xf32, #tpu.memory_space<vmem>>) attributes {dimension_semantics = [], scalar_prefetch = 0 : i64, scratch_operands = 1 : i64, tpu.core_type = #tpu.core_type<tc>} {
    %c0 = arith.constant 0 : index
    %c0_0 = arith.constant 0 : index
    %0 = vector.load %arg0[%c0, %c0_0] : memref<8x32xf32, #tpu.memory_space<vmem>>, vector<8x32xf32>
    %c0_1 = arith.constant 0 : index
    %c0_2 = arith.constant 0 : index
    %1 = vector.load %arg1[%c0_1, %c0_2] : memref<32x128xf32, #tpu.memory_space<vmem>>, vector<32x128xf32>
    %cst = arith.constant dense<0.000000e+00> : vector<8x128xf32>
    %2 = tpu.matmul %0, %1, %cst {dimension_numbers = #tpu.dot_dimension_numbers<[1], [0], [0], [1], [0, 0, 1, 1], [], []>} : vector<8x32xf32>, vector<32x128xf32>, vector<8x128xf32> -> vector<8x128xf32>
    %c0_3 = arith.constant 0 : index
    %c0_4 = arith.constant 0 : index
    %3 = vector.load %arg3[%c0_3, %c0_4] : memref<1x128xf32, #tpu.memory_space<vmem>>, vector<1x128xf32>
    %4 = vector.broadcast %3 : vector<1x128xf32> to vector<8x128xf32>
    %5 = arith.addf %2, %4 : vector<8x128xf32>
    %6 = tpu.iota {dimensions = array<i32: 1>} : vector<1x128xi32>
    %c64_i32 = arith.constant 64 : i32
    %7 = vector.broadcast %c64_i32 : i32 to vector<1x128xi32>
    %8 = arith.cmpi sge, %6, %7 : vector<1x128xi32>
    %c96_i32 = arith.constant 96 : i32
    %9 = vector.broadcast %c96_i32 : i32 to vector<1x128xi32>
    %10 = arith.cmpi slt, %6, %9 : vector<1x128xi32>
    %11 = arith.andi %8, %10 : vector<1x128xi1>
    %cst_5 = arith.constant 1.000000e+00 : f32
    %cst_6 = arith.constant 5.000000e-01 : f32
    %12 = vector.broadcast %cst_5 : f32 to vector<1x128xf32>
    %13 = vector.broadcast %cst_6 : f32 to vector<1x128xf32>
    %14 = arith.select %11, %12, %13 : vector<1x128xi1>, vector<1x128xf32>
    %c0_7 = arith.constant 0 : index
    %c0_8 = arith.constant 0 : index
    %15 = vector.load %arg2[%c0_7, %c0_8] : memref<32x128xf32, #tpu.memory_space<vmem>>, vector<32x128xf32>
    %cst_9 = arith.constant 0.000000e+00 : f32
    %16 = vector.broadcast %cst_9 : f32 to vector<1x32xf32>
    %cst_10 = arith.constant 0.000000e+00 : f32
    %17 = vector.broadcast %cst_10 : f32 to vector<1x32xf32>
    %18 = vector.extract_strided_slice %5 {offsets = [0, 0], sizes = [1, 128], strides = [1, 1]} : vector<8x128xf32> to vector<1x128xf32>
    %cst_11 = arith.constant dense<0.000000e+00> : vector<1x128xf32>
    %19 = tpu.matmul %16, %15, %cst_11 {dimension_numbers = #tpu.dot_dimension_numbers<[1], [0], [0], [1], [0, 0, 1, 1], [], []>} : vector<1x32xf32>, vector<32x128xf32>, vector<1x128xf32> -> vector<1x128xf32>
    %20 = arith.addf %18, %19 : vector<1x128xf32>
    %21 = arith.mulf %20, %14 : vector<1x128xf32>
    %22 = math.tanh %21 : vector<1x128xf32>
    %cst_12 = arith.constant 1.000000e+00 : f32
    %23 = vector.broadcast %cst_12 : f32 to vector<1x128xf32>
    %24 = arith.addf %23, %22 : vector<1x128xf32>
    %cst_13 = arith.constant 5.000000e-01 : f32
    %25 = vector.broadcast %cst_13 : f32 to vector<1x128xf32>
    %26 = arith.mulf %25, %24 : vector<1x128xf32>
    %27 = arith.select %11, %22, %26 : vector<1x128xi1>, vector<1x128xf32>
    %28 = vector.extract_strided_slice %27 {offsets = [0, 0], sizes = [1, 32], strides = [1, 1]} : vector<1x128xf32> to vector<1x32xf32>
    %29 = vector.extract_strided_slice %27 {offsets = [0, 32], sizes = [1, 32], strides = [1, 1]} : vector<1x128xf32> to vector<1x32xf32>
    %30 = vector.extract_strided_slice %27 {offsets = [0, 64], sizes = [1, 32], strides = [1, 1]} : vector<1x128xf32> to vector<1x32xf32>
    %31 = vector.extract_strided_slice %27 {offsets = [0, 96], sizes = [1, 32], strides = [1, 1]} : vector<1x128xf32> to vector<1x32xf32>
    %32 = arith.mulf %29, %17 : vector<1x32xf32>
    %33 = arith.mulf %28, %30 : vector<1x32xf32>
    %34 = arith.addf %32, %33 : vector<1x32xf32>
    %35 = math.tanh %34 : vector<1x32xf32>
    %36 = arith.mulf %31, %35 : vector<1x32xf32>
    %c0_14 = arith.constant 0 : index
    %c0_15 = arith.constant 0 : index
    %37 = vector.load %arg7[%c0_14, %c0_15] : memref<8x32xf32, #tpu.memory_space<vmem>>, vector<1x32xf32>
    tpu.vector_store %arg7[%c0_14, %c0_15], %36 {strides = array<i32>} : memref<8x32xf32, #tpu.memory_space<vmem>>, vector<1x32xf32>,
    %38 = vector.extract_strided_slice %5 {offsets = [1, 0], sizes = [1, 128], strides = [1, 1]} : vector<8x128xf32> to vector<1x128xf32>
    %cst_16 = arith.constant dense<0.000000e+00> : vector<1x128xf32>
    %39 = tpu.matmul %36, %15, %cst_16 {dimension_numbers = #tpu.dot_dimension_numbers<[1], [0], [0], [1], [0, 0, 1, 1], [], []>} : vector<1x32xf32>, vector<32x128xf32>, vector<1x128xf32> -> vector<1x128xf32>
    %40 = arith.addf %38, %39 : vector<1x128xf32>
    %41 = arith.mulf %40, %14 : vector<1x128xf32>
    %42 = math.tanh %41 : vector<1x128xf32>
    %cst_17 = arith.constant 1.000000e+00 : f32
    %43 = vector.broadcast %cst_17 : f32 to vector<1x128xf32>
    %44 = arith.addf %43, %42 : vector<1x128xf32>
    %cst_18 = arith.constant 5.000000e-01 : f32
    %45 = vector.broadcast %cst_18 : f32 to vector<1x128xf32>
    %46 = arith.mulf %45, %44 : vector<1x128xf32>
    %47 = arith.select %11, %42, %46 : vector<1x128xi1>, vector<1x128xf32>
    %48 = vector.extract_strided_slice %47 {offsets = [0, 0], sizes = [1, 32], strides = [1, 1]} : vector<1x128xf32> to vector<1x32xf32>
    %49 = vector.extract_strided_slice %47 {offsets = [0, 32], sizes = [1, 32], strides = [1, 1]} : vector<1x128xf32> to vector<1x32xf32>
    %50 = vector.extract_strided_slice %47 {offsets = [0, 64], sizes = [1, 32], strides = [1, 1]} : vector<1x128xf32> to vector<1x32xf32>
    %51 = vector.extract_strided_slice %47 {offsets = [0, 96], sizes = [1, 32], strides = [1, 1]} : vector<1x128xf32> to vector<1x32xf32>
    %52 = arith.mulf %49, %34 : vector<1x32xf32>
    %53 = arith.mulf %48, %50 : vector<1x32xf32>
    %54 = arith.addf %52, %53 : vector<1x32xf32>
    %55 = math.tanh %54 : vector<1x32xf32>
    %56 = arith.mulf %51, %55 : vector<1x32xf32>
    %c1 = arith.constant 1 : index
    %c0_19 = arith.constant 0 : index
    %57 = vector.load %arg7[%c1, %c0_19] : memref<8x32xf32, #tpu.memory_space<vmem>>, vector<1x32xf32>
    tpu.vector_store %arg7[%c1, %c0_19], %56 {strides = array<i32>} : memref<8x32xf32, #tpu.memory_space<vmem>>, vector<1x32xf32>,
    %58 = vector.extract_strided_slice %5 {offsets = [2, 0], sizes = [1, 128], strides = [1, 1]} : vector<8x128xf32> to vector<1x128xf32>
    %cst_20 = arith.constant dense<0.000000e+00> : vector<1x128xf32>
    %59 = tpu.matmul %56, %15, %cst_20 {dimension_numbers = #tpu.dot_dimension_numbers<[1], [0], [0], [1], [0, 0, 1, 1], [], []>} : vector<1x32xf32>, vector<32x128xf32>, vector<1x128xf32> -> vector<1x128xf32>
    %60 = arith.addf %58, %59 : vector<1x128xf32>
    %61 = arith.mulf %60, %14 : vector<1x128xf32>
    %62 = math.tanh %61 : vector<1x128xf32>
    %cst_21 = arith.constant 1.000000e+00 : f32
    %63 = vector.broadcast %cst_21 : f32 to vector<1x128xf32>
    %64 = arith.addf %63, %62 : vector<1x128xf32>
    %cst_22 = arith.constant 5.000000e-01 : f32
    %65 = vector.broadcast %cst_22 : f32 to vector<1x128xf32>
    %66 = arith.mulf %65, %64 : vector<1x128xf32>
    %67 = arith.select %11, %62, %66 : vector<1x128xi1>, vector<1x128xf32>
    %68 = vector.extract_strided_slice %67 {offsets = [0, 0], sizes = [1, 32], strides = [1, 1]} : vector<1x128xf32> to vector<1x32xf32>
    %69 = vector.extract_strided_slice %67 {offsets = [0, 32], sizes = [1, 32], strides = [1, 1]} : vector<1x128xf32> to vector<1x32xf32>
    %70 = vector.extract_strided_slice %67 {offsets = [0, 64], sizes = [1, 32], strides = [1, 1]} : vector<1x128xf32> to vector<1x32xf32>
    %71 = vector.extract_strided_slice %67 {offsets = [0, 96], sizes = [1, 32], strides = [1, 1]} : vector<1x128xf32> to vector<1x32xf32>
    %72 = arith.mulf %69, %54 : vector<1x32xf32>
    %73 = arith.mulf %68, %70 : vector<1x32xf32>
    %74 = arith.addf %72, %73 : vector<1x32xf32>
    %75 = math.tanh %74 : vector<1x32xf32>
    %76 = arith.mulf %71, %75 : vector<1x32xf32>
    %c2 = arith.constant 2 : index
    %c0_23 = arith.constant 0 : index
    %77 = vector.load %arg7[%c2, %c0_23] : memref<8x32xf32, #tpu.memory_space<vmem>>, vector<1x32xf32>
    tpu.vector_store %arg7[%c2, %c0_23], %76 {strides = array<i32>} : memref<8x32xf32, #tpu.memory_space<vmem>>, vector<1x32xf32>,
    %78 = vector.extract_strided_slice %5 {offsets = [3, 0], sizes = [1, 128], strides = [1, 1]} : vector<8x128xf32> to vector<1x128xf32>
    %cst_24 = arith.constant dense<0.000000e+00> : vector<1x128xf32>
    %79 = tpu.matmul %76, %15, %cst_24 {dimension_numbers = #tpu.dot_dimension_numbers<[1], [0], [0], [1], [0, 0, 1, 1], [], []>} : vector<1x32xf32>, vector<32x128xf32>, vector<1x128xf32> -> vector<1x128xf32>
    %80 = arith.addf %78, %79 : vector<1x128xf32>
    %81 = arith.mulf %80, %14 : vector<1x128xf32>
    %82 = math.tanh %81 : vector<1x128xf32>
    %cst_25 = arith.constant 1.000000e+00 : f32
    %83 = vector.broadcast %cst_25 : f32 to vector<1x128xf32>
    %84 = arith.addf %83, %82 : vector<1x128xf32>
    %cst_26 = arith.constant 5.000000e-01 : f32
    %85 = vector.broadcast %cst_26 : f32 to vector<1x128xf32>
    %86 = arith.mulf %85, %84 : vector<1x128xf32>
    %87 = arith.select %11, %82, %86 : vector<1x128xi1>, vector<1x128xf32>
    %88 = vector.extract_strided_slice %87 {offsets = [0, 0], sizes = [1, 32], strides = [1, 1]} : vector<1x128xf32> to vector<1x32xf32>
    %89 = vector.extract_strided_slice %87 {offsets = [0, 32], sizes = [1, 32], strides = [1, 1]} : vector<1x128xf32> to vector<1x32xf32>
    %90 = vector.extract_strided_slice %87 {offsets = [0, 64], sizes = [1, 32], strides = [1, 1]} : vector<1x128xf32> to vector<1x32xf32>
    %91 = vector.extract_strided_slice %87 {offsets = [0, 96], sizes = [1, 32], strides = [1, 1]} : vector<1x128xf32> to vector<1x32xf32>
    %92 = arith.mulf %89, %74 : vector<1x32xf32>
    %93 = arith.mulf %88, %90 : vector<1x32xf32>
    %94 = arith.addf %92, %93 : vector<1x32xf32>
    %95 = math.tanh %94 : vector<1x32xf32>
    %96 = arith.mulf %91, %95 : vector<1x32xf32>
    %c3 = arith.constant 3 : index
    %c0_27 = arith.constant 0 : index
    %97 = vector.load %arg7[%c3, %c0_27] : memref<8x32xf32, #tpu.memory_space<vmem>>, vector<1x32xf32>
    tpu.vector_store %arg7[%c3, %c0_27], %96 {strides = array<i32>} : memref<8x32xf32, #tpu.memory_space<vmem>>, vector<1x32xf32>,
    %98 = vector.extract_strided_slice %5 {offsets = [4, 0], sizes = [1, 128], strides = [1, 1]} : vector<8x128xf32> to vector<1x128xf32>
    %cst_28 = arith.constant dense<0.000000e+00> : vector<1x128xf32>
    %99 = tpu.matmul %96, %15, %cst_28 {dimension_numbers = #tpu.dot_dimension_numbers<[1], [0], [0], [1], [0, 0, 1, 1], [], []>} : vector<1x32xf32>, vector<32x128xf32>, vector<1x128xf32> -> vector<1x128xf32>
    %100 = arith.addf %98, %99 : vector<1x128xf32>
    %101 = arith.mulf %100, %14 : vector<1x128xf32>
    %102 = math.tanh %101 : vector<1x128xf32>
    %cst_29 = arith.constant 1.000000e+00 : f32
    %103 = vector.broadcast %cst_29 : f32 to vector<1x128xf32>
    %104 = arith.addf %103, %102 : vector<1x128xf32>
    %cst_30 = arith.constant 5.000000e-01 : f32
    %105 = vector.broadcast %cst_30 : f32 to vector<1x128xf32>
    %106 = arith.mulf %105, %104 : vector<1x128xf32>
    %107 = arith.select %11, %102, %106 : vector<1x128xi1>, vector<1x128xf32>
    %108 = vector.extract_strided_slice %107 {offsets = [0, 0], sizes = [1, 32], strides = [1, 1]} : vector<1x128xf32> to vector<1x32xf32>
    %109 = vector.extract_strided_slice %107 {offsets = [0, 32], sizes = [1, 32], strides = [1, 1]} : vector<1x128xf32> to vector<1x32xf32>
    %110 = vector.extract_strided_slice %107 {offsets = [0, 64], sizes = [1, 32], strides = [1, 1]} : vector<1x128xf32> to vector<1x32xf32>
    %111 = vector.extract_strided_slice %107 {offsets = [0, 96], sizes = [1, 32], strides = [1, 1]} : vector<1x128xf32> to vector<1x32xf32>
    %112 = arith.mulf %109, %94 : vector<1x32xf32>
    %113 = arith.mulf %108, %110 : vector<1x32xf32>
    %114 = arith.addf %112, %113 : vector<1x32xf32>
    %115 = math.tanh %114 : vector<1x32xf32>
    %116 = arith.mulf %111, %115 : vector<1x32xf32>
    %c4 = arith.constant 4 : index
    %c0_31 = arith.constant 0 : index
    %117 = vector.load %arg7[%c4, %c0_31] : memref<8x32xf32, #tpu.memory_space<vmem>>, vector<1x32xf32>
    tpu.vector_store %arg7[%c4, %c0_31], %116 {strides = array<i32>} : memref<8x32xf32, #tpu.memory_space<vmem>>, vector<1x32xf32>,
    %118 = vector.extract_strided_slice %5 {offsets = [5, 0], sizes = [1, 128], strides = [1, 1]} : vector<8x128xf32> to vector<1x128xf32>
    %cst_32 = arith.constant dense<0.000000e+00> : vector<1x128xf32>
    %119 = tpu.matmul %116, %15, %cst_32 {dimension_numbers = #tpu.dot_dimension_numbers<[1], [0], [0], [1], [0, 0, 1, 1], [], []>} : vector<1x32xf32>, vector<32x128xf32>, vector<1x128xf32> -> vector<1x128xf32>
    %120 = arith.addf %118, %119 : vector<1x128xf32>
    %121 = arith.mulf %120, %14 : vector<1x128xf32>
    %122 = math.tanh %121 : vector<1x128xf32>
    %cst_33 = arith.constant 1.000000e+00 : f32
    %123 = vector.broadcast %cst_33 : f32 to vector<1x128xf32>
    %124 = arith.addf %123, %122 : vector<1x128xf32>
    %cst_34 = arith.constant 5.000000e-01 : f32
    %125 = vector.broadcast %cst_34 : f32 to vector<1x128xf32>
    %126 = arith.mulf %125, %124 : vector<1x128xf32>
    %127 = arith.select %11, %122, %126 : vector<1x128xi1>, vector<1x128xf32>
    %128 = vector.extract_strided_slice %127 {offsets = [0, 0], sizes = [1, 32], strides = [1, 1]} : vector<1x128xf32> to vector<1x32xf32>
    %129 = vector.extract_strided_slice %127 {offsets = [0, 32], sizes = [1, 32], strides = [1, 1]} : vector<1x128xf32> to vector<1x32xf32>
    %130 = vector.extract_strided_slice %127 {offsets = [0, 64], sizes = [1, 32], strides = [1, 1]} : vector<1x128xf32> to vector<1x32xf32>
    %131 = vector.extract_strided_slice %127 {offsets = [0, 96], sizes = [1, 32], strides = [1, 1]} : vector<1x128xf32> to vector<1x32xf32>
    %132 = arith.mulf %129, %114 : vector<1x32xf32>
    %133 = arith.mulf %128, %130 : vector<1x32xf32>
    %134 = arith.addf %132, %133 : vector<1x32xf32>
    %135 = math.tanh %134 : vector<1x32xf32>
    %136 = arith.mulf %131, %135 : vector<1x32xf32>
    %c5 = arith.constant 5 : index
    %c0_35 = arith.constant 0 : index
    %137 = vector.load %arg7[%c5, %c0_35] : memref<8x32xf32, #tpu.memory_space<vmem>>, vector<1x32xf32>
    tpu.vector_store %arg7[%c5, %c0_35], %136 {strides = array<i32>} : memref<8x32xf32, #tpu.memory_space<vmem>>, vector<1x32xf32>,
    %138 = vector.extract_strided_slice %5 {offsets = [6, 0], sizes = [1, 128], strides = [1, 1]} : vector<8x128xf32> to vector<1x128xf32>
    %cst_36 = arith.constant dense<0.000000e+00> : vector<1x128xf32>
    %139 = tpu.matmul %136, %15, %cst_36 {dimension_numbers = #tpu.dot_dimension_numbers<[1], [0], [0], [1], [0, 0, 1, 1], [], []>} : vector<1x32xf32>, vector<32x128xf32>, vector<1x128xf32> -> vector<1x128xf32>
    %140 = arith.addf %138, %139 : vector<1x128xf32>
    %141 = arith.mulf %140, %14 : vector<1x128xf32>
    %142 = math.tanh %141 : vector<1x128xf32>
    %cst_37 = arith.constant 1.000000e+00 : f32
    %143 = vector.broadcast %cst_37 : f32 to vector<1x128xf32>
    %144 = arith.addf %143, %142 : vector<1x128xf32>
    %cst_38 = arith.constant 5.000000e-01 : f32
    %145 = vector.broadcast %cst_38 : f32 to vector<1x128xf32>
    %146 = arith.mulf %145, %144 : vector<1x128xf32>
    %147 = arith.select %11, %142, %146 : vector<1x128xi1>, vector<1x128xf32>
    %148 = vector.extract_strided_slice %147 {offsets = [0, 0], sizes = [1, 32], strides = [1, 1]} : vector<1x128xf32> to vector<1x32xf32>
    %149 = vector.extract_strided_slice %147 {offsets = [0, 32], sizes = [1, 32], strides = [1, 1]} : vector<1x128xf32> to vector<1x32xf32>
    %150 = vector.extract_strided_slice %147 {offsets = [0, 64], sizes = [1, 32], strides = [1, 1]} : vector<1x128xf32> to vector<1x32xf32>
    %151 = vector.extract_strided_slice %147 {offsets = [0, 96], sizes = [1, 32], strides = [1, 1]} : vector<1x128xf32> to vector<1x32xf32>
    %152 = arith.mulf %149, %134 : vector<1x32xf32>
    %153 = arith.mulf %148, %150 : vector<1x32xf32>
    %154 = arith.addf %152, %153 : vector<1x32xf32>
    %155 = math.tanh %154 : vector<1x32xf32>
    %156 = arith.mulf %151, %155 : vector<1x32xf32>
    %c6 = arith.constant 6 : index
    %c0_39 = arith.constant 0 : index
    %157 = vector.load %arg7[%c6, %c0_39] : memref<8x32xf32, #tpu.memory_space<vmem>>, vector<1x32xf32>
    tpu.vector_store %arg7[%c6, %c0_39], %156 {strides = array<i32>} : memref<8x32xf32, #tpu.memory_space<vmem>>, vector<1x32xf32>,
    %158 = vector.extract_strided_slice %5 {offsets = [7, 0], sizes = [1, 128], strides = [1, 1]} : vector<8x128xf32> to vector<1x128xf32>
    %cst_40 = arith.constant dense<0.000000e+00> : vector<1x128xf32>
    %159 = tpu.matmul %156, %15, %cst_40 {dimension_numbers = #tpu.dot_dimension_numbers<[1], [0], [0], [1], [0, 0, 1, 1], [], []>} : vector<1x32xf32>, vector<32x128xf32>, vector<1x128xf32> -> vector<1x128xf32>
    %160 = arith.addf %158, %159 : vector<1x128xf32>
    %161 = arith.mulf %160, %14 : vector<1x128xf32>
    %162 = math.tanh %161 : vector<1x128xf32>
    %cst_41 = arith.constant 1.000000e+00 : f32
    %163 = vector.broadcast %cst_41 : f32 to vector<1x128xf32>
    %164 = arith.addf %163, %162 : vector<1x128xf32>
    %cst_42 = arith.constant 5.000000e-01 : f32
    %165 = vector.broadcast %cst_42 : f32 to vector<1x128xf32>
    %166 = arith.mulf %165, %164 : vector<1x128xf32>
    %167 = arith.select %11, %162, %166 : vector<1x128xi1>, vector<1x128xf32>
    %168 = vector.extract_strided_slice %167 {offsets = [0, 0], sizes = [1, 32], strides = [1, 1]} : vector<1x128xf32> to vector<1x32xf32>
    %169 = vector.extract_strided_slice %167 {offsets = [0, 32], sizes = [1, 32], strides = [1, 1]} : vector<1x128xf32> to vector<1x32xf32>
    %170 = vector.extract_strided_slice %167 {offsets = [0, 64], sizes = [1, 32], strides = [1, 1]} : vector<1x128xf32> to vector<1x32xf32>
    %171 = vector.extract_strided_slice %167 {offsets = [0, 96], sizes = [1, 32], strides = [1, 1]} : vector<1x128xf32> to vector<1x32xf32>
    %172 = arith.mulf %169, %154 : vector<1x32xf32>
    %173 = arith.mulf %168, %170 : vector<1x32xf32>
    %174 = arith.addf %172, %173 : vector<1x32xf32>
    %175 = math.tanh %174 : vector<1x32xf32>
    %176 = arith.mulf %171, %175 : vector<1x32xf32>
    %c7 = arith.constant 7 : index
    %c0_43 = arith.constant 0 : index
    %177 = vector.load %arg7[%c7, %c0_43] : memref<8x32xf32, #tpu.memory_space<vmem>>, vector<1x32xf32>
    tpu.vector_store %arg7[%c7, %c0_43], %176 {strides = array<i32>} : memref<8x32xf32, #tpu.memory_space<vmem>>, vector<1x32xf32>,
    %c0_44 = arith.constant 0 : index
    %c0_45 = arith.constant 0 : index
    %178 = vector.load %arg7[%c0_44, %c0_45] : memref<8x32xf32, #tpu.memory_space<vmem>>, vector<8x32xf32>
    %c0_46 = arith.constant 0 : index
    %c0_47 = arith.constant 0 : index
    %179 = vector.load %arg4[%c0_46, %c0_47] : memref<32x128xf32, #tpu.memory_space<vmem>>, vector<32x128xf32>
    %cst_48 = arith.constant dense<0.000000e+00> : vector<8x128xf32>
    %180 = tpu.matmul %178, %179, %cst_48 {dimension_numbers = #tpu.dot_dimension_numbers<[1], [0], [0], [1], [0, 0, 1, 1], [], []>} : vector<8x32xf32>, vector<32x128xf32>, vector<8x128xf32> -> vector<8x128xf32>
    %c0_49 = arith.constant 0 : index
    %c0_50 = arith.constant 0 : index
    %181 = vector.load %arg5[%c0_49, %c0_50] : memref<1x128xf32, #tpu.memory_space<vmem>>, vector<1x128xf32>
    %182 = vector.broadcast %181 : vector<1x128xf32> to vector<8x128xf32>
    %183 = arith.addf %180, %182 : vector<8x128xf32>
    %cst_51 = arith.constant dense<0xFF800000> : vector<8xf32>
    %184 = vector.multi_reduction <maximumf>, %183, %cst_51 [1] : vector<8x128xf32> to vector<8xf32>
    %185 = vector.shape_cast %184 : vector<8xf32> to vector<8x1xf32>
    %186 = vector.broadcast %185 : vector<8x1xf32> to vector<8x128xf32>
    %187 = arith.subf %183, %186 : vector<8x128xf32>
    %188 = math.exp %187 : vector<8x128xf32>
    %cst_52 = arith.constant dense<0.000000e+00> : vector<8xf32>
    %189 = vector.multi_reduction <add>, %188, %cst_52 [1] : vector<8x128xf32> to vector<8xf32>
    %190 = vector.shape_cast %189 : vector<8xf32> to vector<8x1xf32>
    %191 = math.log %190 : vector<8x1xf32>
    %192 = arith.addf %191, %185 : vector<8x1xf32>
    %193 = vector.broadcast %192 : vector<8x1xf32> to vector<8x128xf32>
    %194 = arith.subf %183, %193 : vector<8x128xf32>
    %c0_53 = arith.constant 0 : index
    %c0_54 = arith.constant 0 : index
    %195 = vector.load %arg6[%c0_53, %c0_54] : memref<8x128xf32, #tpu.memory_space<vmem>>, vector<8x128xf32>
    tpu.vector_store %arg6[%c0_53, %c0_54], %194 {strides = array<i32>} : memref<8x128xf32, #tpu.memory_space<vmem>>, vector<8x128xf32>,
    return
  }
}

</mosaic_0001>

<llo_original>
// kernel: tpu_custom_call.1
$region0: #{tpu_custom_call.1}
  #allocation0 [shape = 'u32[]', space=smem, size = 0x4, offset = 0x4, fixed_abs, tag = 'smem constant byte address 0x4 - core index']
  #allocation1 [shape = 'u32[72,128]{1,0:T(1,128)}', space=vmem, size = 0x9000, scoped, tag = 'internal scratch']
  #allocation2 [shape = 'f32[8,32]{1,0:T(8,128)}', space=vmem, size = 0x1000, scoped, tag = 'scratch operand']
  %s0 = inlined_call_operand.hbm [shape: f32[8,32], index: 0, kind: input, shape index: {}]
  %s1 = inlined_call_operand.hbm [shape: f32[32,128], index: 1, kind: input, shape index: {}]
  %s2 = inlined_call_operand.hbm [shape: f32[32,128], index: 2, kind: input, shape index: {}]
  %s3 = inlined_call_operand.vmem [shape: f32[1,128], index: 3, kind: input, shape index: {}]
  %s4 = inlined_call_operand.hbm [shape: f32[32,128], index: 4, kind: input, shape index: {}]
  %s5 = inlined_call_operand.vmem [shape: f32[1,128], index: 5, kind: input, shape index: {}]
  %s6 = inlined_call_operand.hbm [shape: f32[8,128], index: 6, kind: output, shape index: {}]
  %s7 = sld [smem:[#allocation0]]
  $region50: #{tpu_custom_call.1} parent=0
    _
  %s9 = ssub.s32 1, %s7
  %s10 = scalar_select 0, %s9, %s7
  $region1: #{tpu_custom_call.1} parent=0
    #allocation3 [shape = 'u8[4096]{0}', space=vmem, size = 0x1000, scoped, tag = 'input window, operand 0, single buffered']
    #allocation4 [shape = 's32[1]{0}', space=sflag, size = 0x4, scoped, tag = 'scoped memory for tpu_custom_call.1']
    #allocation5 [shape = 's32[1]{0}', space=sflag, size = 0x4, scoped, tag = 'scoped memory for tpu_custom_call.1']
    #allocation6 [shape = 'u8[16384]{0}', space=vmem, size = 0x4000, scoped, tag = 'input window, operand 1, single buffered']
    #allocation7 [shape = 's32[1]{0}', space=sflag, size = 0x4, scoped, tag = 'scoped memory for tpu_custom_call.1']
    #allocation8 [shape = 'u8[16384]{0}', space=vmem, size = 0x4000, scoped, tag = 'input window, operand 2, single buffered']
    #allocation9 [shape = 'u8[16384]{0}', space=vmem, size = 0x4000, scoped, tag = 'input window, operand 4, single buffered']
    #allocation10 [shape = 's32[1]{0}', space=sflag, size = 0x4, scoped, tag = 'scoped memory for tpu_custom_call.1']
    #allocation11 [shape = 'u8[4096]{0}', space=vmem, size = 0x1000, scoped, tag = 'output window, operand 0, single buffered']
    %11 = vsyncpa [#allocation4], 0
    %12 = vsyncpa [#allocation7], 0
    %13 = vsyncpa [#allocation10], 0
    %14 = vsyncpa [#allocation5], 0
    // Predicated region
    $region2: #{tpu_custom_call.1} parent=1 // pred_check
      _
    $region3: #{tpu_custom_call.1} parent=1 // pred_check_branch
      %16 = sbr.rel (0) target = $region5
    $region4: #{tpu_custom_call.1} parent=1 // pred_region
      %18 = vsyncadd [#allocation4], 0
      %s20 = sshll.u32 %s0, 4
      %s21 = int_to_ptr.hbm [resolvable:$true] %s20
      %s22 = sshll.u32 [#allocation3], 4
      %s23 = int_to_ptr.vmem [resolvable:$true] %s22
      %25 = dma.hbm_to_vmem [thread:$0]  %s21, 128, %s23, [#allocation4]
    $region5: #{tpu_custom_call.1} parent=1 // pred_fallthru
      _
    // Predicated region
    $region6: #{tpu_custom_call.1} parent=1 // pred_check
      _
    $region7: #{tpu_custom_call.1} parent=1 // pred_check_branch
      %27 = sbr.rel (0) target = $region9
    $region8: #{tpu_custom_call.1} parent=1 // pred_region
      %29 = vsyncadd [#allocation7], 0
      %s30 = sshll.u32 %s1, 4
      %s31 = int_to_ptr.hbm [resolvable:$true] %s30
      %s32 = sshll.u32 [#allocation6], 4
      %s33 = int_to_ptr.vmem [resolvable:$true] %s32
      %38 = dma.hbm_to_vmem [thread:$0]  %s31, 512, %s33, [#allocation7], 128, 128, 8
    $region9: #{tpu_custom_call.1} parent=1 // pred_fallthru
      _
    // Predicated region
    $region10: #{tpu_custom_call.1} parent=1 // pred_check
      _
    $region11: #{tpu_custom_call.1} parent=1 // pred_check_branch
      %40 = sbr.rel (0) target = $region13
    $region12: #{tpu_custom_call.1} parent=1 // pred_region
      %42 = vsyncadd [#allocation7], 0
      %s43 = sshll.u32 %s2, 4
      %s44 = int_to_ptr.hbm [resolvable:$true] %s43
      %s45 = sshll.u32 [#allocation8], 4
      %s46 = int_to_ptr.vmem [resolvable:$true] %s45
      %51 = dma.hbm_to_vmem [thread:$0]  %s44, 512, %s46, [#allocation7], 128, 128, 8
    $region13: #{tpu_custom_call.1} parent=1 // pred_fallthru
      _
    // Predicated region
    $region14: #{tpu_custom_call.1} parent=1 // pred_check
      _
    $region15: #{tpu_custom_call.1} parent=1 // pred_check_branch
      %53 = sbr.rel (0) target = $region17
    $region16: #{tpu_custom_call.1} parent=1 // pred_region
      _
    $region17: #{tpu_custom_call.1} parent=1 // pred_fallthru
      _
    // Predicated region
    $region18: #{tpu_custom_call.1} parent=1 // pred_check
      _
    $region19: #{tpu_custom_call.1} parent=1 // pred_check_branch
      %55 = sbr.rel (0) target = $region21
    $region20: #{tpu_custom_call.1} parent=1 // pred_region
      %57 = vsyncadd [#allocation10], 0
      %s58 = sshll.u32 %s4, 4
      %s59 = int_to_ptr.hbm [resolvable:$true] %s58
      %s60 = sshll.u32 [#allocation9], 4
      %s61 = int_to_ptr.vmem [resolvable:$true] %s60
      %66 = dma.hbm_to_vmem [thread:$0]  %s59, 512, %s61, [#allocation10], 128, 128, 8
    $region21: #{tpu_custom_call.1} parent=1 // pred_fallthru
      _
    // Predicated region
    $region22: #{tpu_custom_call.1} parent=1 // pred_check
      _
    $region23: #{tpu_custom_call.1} parent=1 // pred_check_branch
      %68 = sbr.rel (0) target = $region25
    $region24: #{tpu_custom_call.1} parent=1 // pred_region
      _
    $region25: #{tpu_custom_call.1} parent=1 // pred_fallthru
      _
    // Predicated region
    $region26: #{tpu_custom_call.1} parent=1 // pred_check
      _
    $region27: #{tpu_custom_call.1} parent=1 // pred_check_branch
      %70 = sbr.rel (0) target = $region29
    $region28: #{tpu_custom_call.1} parent=1 // pred_region
      %72 = dma.done [#allocation4], 128
    $region29: #{tpu_custom_call.1} parent=1 // pred_fallthru
      _
    // Predicated region
    $region30: #{tpu_custom_call.1} parent=1 // pred_check
      _
    $region31: #{tpu_custom_call.1} parent=1 // pred_check_branch
      %74 = sbr.rel (0) target = $region33
    $region32: #{tpu_custom_call.1} parent=1 // pred_region
      %76 = dma.done [#allocation7], 512
    $region33: #{tpu_custom_call.1} parent=1 // pred_fallthru
      _
    // Predicated region
    $region34: #{tpu_custom_call.1} parent=1 // pred_check
      _
    $region35: #{tpu_custom_call.1} parent=1 // pred_check_branch
      %78 = sbr.rel (0) target = $region37
    $region36: #{tpu_custom_call.1} parent=1 // pred_region
      %80 = dma.done [#allocation7], 512
    $region37: #{tpu_custom_call.1} parent=1 // pred_fallthru
      _
    // Predicated region
    $region38: #{tpu_custom_call.1} parent=1 // pred_check
      _
    $region39: #{tpu_custom_call.1} parent=1 // pred_check_branch
      %82 = sbr.rel (0) target = $region41
    $region40: #{tpu_custom_call.1} parent=1 // pred_region
      %84 = dma.done [#allocation10], 512
    $region41: #{tpu_custom_call.1} parent=1 // pred_fallthru
      _
    %v85 = vld [vmem:[#allocation3] sm:$0xff]
    %v86 = vld [vmem:[#allocation6] sm:$0xff]
    %v87 = vld [vmem:[#allocation6 + $0x8] sm:$0xff]
    %v88 = vld [vmem:[#allocation6 + $0x10] sm:$0xff]
    %v89 = vld [vmem:[#allocation6 + $0x18] sm:$0xff]
    %v90 = vld [vmem:[%s3] sm:$0x1]
    %v92 = vperm.slane %v90, 0
    %vm94 = vcmask 261120
    %v96 = vsel %vm94, %v85, 0
    %98 = vmatpush.msra.mxu0 0.0
    %99 = vmatpush.msra.mxu0 0.0
    %100 = vmatpush.msra.mxu0 0.0
    %101 = vmatpush.msra.mxu0 0.0
    %102 = vmatpush.msra.mxu0 0.0
    %103 = vmatpush.msra.mxu0 0.0
    %104 = vmatpush.msra.mxu0 0.0
    %105 = vmatpush.msra.mxu0 0.0
    %106 = vmatpush.msra.mxu0 0.0
    %107 = vmatpush.msra.mxu0 0.0
    %108 = vmatpush.msra.mxu0 0.0
    %109 = vmatpush.msra.mxu0 0.0
    %110 = vmatpush.msra.mxu0 %v89
    %111 = vmatpush.msra.mxu0 %v88
    %112 = vmatpush.msra.mxu0 %v87
    %113 = vmatpush.msra.mxu0 %v86
    %114 = vmatmul.f32.gmra.mxu0 %v96
    %v115 = vpop.f32.mrf.mxu0
    %v116 = vadd.f32 %v92, %v115
    %117 = vdwg.mxu0
    %v118 = vlaneseq
    %v119 = vand.u32 %v118, 127
    %vm120 = vcmp.ge.s32.totalorder %v119, 64
    %vm121 = vcmp.lt.s32.totalorder %v119, 96
    %vm122 = vmand %vm120, %vm121
    %v123 = vsel %vm122, 1.0, 0.5
    %v124 = vld [vmem:[#allocation8] sm:$0xff]
    %v125 = vld [vmem:[#allocation8 + $0x8] sm:$0xff]
    %v126 = vld [vmem:[#allocation8 + $0x10] sm:$0xff]
    %v127 = vld [vmem:[#allocation8 + $0x18] sm:$0xff]
    %v129 = vsel %vm94, 0.0, 0
    %131 = vmatpush.msra.mxu0 0.0
    %132 = vmatpush.msra.mxu0 0.0
    %133 = vmatpush.msra.mxu0 0.0
    %134 = vmatpush.msra.mxu0 0.0
    %135 = vmatpush.msra.mxu0 0.0
    %136 = vmatpush.msra.mxu0 0.0
    %137 = vmatpush.msra.mxu0 0.0
    %138 = vmatpush.msra.mxu0 0.0
    %139 = vmatpush.msra.mxu0 0.0
    %140 = vmatpush.msra.mxu0 0.0
    %141 = vmatpush.msra.mxu0 0.0
    %142 = vmatpush.msra.mxu0 0.0
    %143 = vmatpush.msra.mxu0 %v127
    %144 = vmatpush.msra.mxu0 %v126
    %145 = vmatpush.msra.mxu0 %v125
    %146 = vmatpush.msra.mxu0 %v124
    %147 = vmatmul.f32.gmra.mxu0 %v129
    %v148 = vpop.f32.mrf.mxu0
    %v149 = vadd.f32 0.0, %v148
    %150 = vdwg.mxu0
    %v151 = vadd.f32 %v116, %v149
    %v152 = vmul.f32 %v151, %v123
    %v153 = vtanh.pop %v152
    %v154 = vadd.f32 %v153, 1.0
    %v155 = vmul.f32 %v154, 0.5
    %v156 = vsel %vm122, %v153, %v155
    %v157 = vmul.f32 %v156, 0.0
    %159 = vrot.lane.b32.xlu0 %v156, 64
    %v160 = vpop.permute.xlu0 %159
    %v162 = vmul.f32 %v156, %v160
    %164 = vrot.lane.b32.xlu0 %v162, 32
    %v165 = vpop.permute.xlu0 %164
    %v167 = vadd.f32 %v157, %v165
    %v168 = vtanh.pop %v167
    %170 = vrot.lane.b32.xlu0 %v168, 64
    %v171 = vpop.permute.xlu0 %170
    %v173 = vmul.f32 %v156, %v171
    %175 = vrot.lane.b32.xlu0 %v173, 32
    %v176 = vpop.permute.xlu0 %175
    %vm178 = vcmask 253952
    %179 = vst.msk [vmem:[#allocation2] sm:$0x1] %vm178, %v176
    %v180 = vsel %vm94, %v176, 0
    %182 = vmatpush.msra.mxu0 0.0
    %183 = vmatpush.msra.mxu0 0.0
    %184 = vmatpush.msra.mxu0 0.0
    %185 = vmatpush.msra.mxu0 0.0
    %186 = vmatpush.msra.mxu0 0.0
    %187 = vmatpush.msra.mxu0 0.0
    %188 = vmatpush.msra.mxu0 0.0
    %189 = vmatpush.msra.mxu0 0.0
    %190 = vmatpush.msra.mxu0 0.0
    %191 = vmatpush.msra.mxu0 0.0
    %192 = vmatpush.msra.mxu0 0.0
    %193 = vmatpush.msra.mxu0 0.0
    %194 = vmatpush.msra.mxu0 %v127
    %195 = vmatpush.msra.mxu0 %v126
    %196 = vmatpush.msra.mxu0 %v125
    %197 = vmatpush.msra.mxu0 %v124
    %198 = vmatmul.f32.gmra.mxu0 %v180
    %v199 = vpop.f32.mrf.mxu0
    %v200 = vadd.f32 0.0, %v199
    %201 = vdwg.mxu0
    %v203 = vrot.slane %v200, 7
    %v205 = vadd.f32 %v116, %v203
    %v206 = vmul.f32 %v205, %v123
    %v207 = vtanh.pop %v206
    %v208 = vadd.f32 %v207, 1.0
    %v209 = vmul.f32 %v208, 0.5
    %v210 = vsel %vm122, %v207, %v209
    %v212 = vrot.slane %v167, 7
    %v214 = vmul.f32 %v210, %v212
    %216 = vrot.lane.b32.xlu0 %v210, 64
    %v217 = vpop.permute.xlu0 %216
    %v219 = vmul.f32 %v210, %v217
    %221 = vrot.lane.b32.xlu0 %v219, 32
    %v222 = vpop.permute.xlu0 %221
    %v224 = vadd.f32 %v214, %v222
    %v225 = vtanh.pop %v224
    %227 = vrot.lane.b32.xlu0 %v225, 64
    %v228 = vpop.permute.xlu0 %227
    %v230 = vmul.f32 %v210, %v228
    %232 = vrot.lane.b32.xlu0 %v230, 32
    %v233 = vpop.permute.xlu0 %232
    %vm235 = vcmask 254977
    %236 = vst.msk [vmem:[#allocation2] sm:$0x2] %vm235, %v233
    %v237 = vrot.slane %v230, 1
    %238 = vrot.lane.b32.xlu0 %v237, 32
    %v239 = vpop.permute.xlu0 %238
    %v240 = vsel %vm94, %v239, 0
    %242 = vmatpush.msra.mxu0 0.0
    %243 = vmatpush.msra.mxu0 0.0
    %244 = vmatpush.msra.mxu0 0.0
    %245 = vmatpush.msra.mxu0 0.0
    %246 = vmatpush.msra.mxu0 0.0
    %247 = vmatpush.msra.mxu0 0.0
    %248 = vmatpush.msra.mxu0 0.0
    %249 = vmatpush.msra.mxu0 0.0
    %250 = vmatpush.msra.mxu0 0.0
    %251 = vmatpush.msra.mxu0 0.0
    %252 = vmatpush.msra.mxu0 0.0
    %253 = vmatpush.msra.mxu0 0.0
    %254 = vmatpush.msra.mxu0 %v127
    %255 = vmatpush.msra.mxu0 %v126
    %256 = vmatpush.msra.mxu0 %v125
    %257 = vmatpush.msra.mxu0 %v124
    %258 = vmatmul.f32.gmra.mxu0 %v240
    %v259 = vpop.f32.mrf.mxu0
    %v260 = vadd.f32 0.0, %v259
    %261 = vdwg.mxu0
    %v263 = vrot.slane %v260, 6
    %v265 = vadd.f32 %v116, %v263
    %v266 = vmul.f32 %v265, %v123
    %v267 = vtanh.pop %v266
    %v268 = vadd.f32 %v267, 1.0
    %v269 = vmul.f32 %v268, 0.5
    %v270 = vsel %vm122, %v267, %v269
    %v272 = vrot.slane %v224, 7
    %v274 = vmul.f32 %v270, %v272
    %276 = vrot.lane.b32.xlu0 %v270, 64
    %v277 = vpop.permute.xlu0 %276
    %v279 = vmul.f32 %v270, %v277
    %281 = vrot.lane.b32.xlu0 %v279, 32
    %v282 = vpop.permute.xlu0 %281
    %v284 = vadd.f32 %v274, %v282
    %v285 = vtanh.pop %v284
    %287 = vrot.lane.b32.xlu0 %v285, 64
    %v288 = vpop.permute.xlu0 %287
    %v290 = vmul.f32 %v270, %v288
    %292 = vrot.lane.b32.xlu0 %v290, 32
    %v293 = vpop.permute.xlu0 %292
    %vm295 = vcmask 256002
    %296 = vst.msk [vmem:[#allocation2] sm:$0x4] %vm295, %v293
    %v297 = vrot.slane %v290, 2
    %298 = vrot.lane.b32.xlu0 %v297, 32
    %v299 = vpop.permute.xlu0 %298
    %v300 = vsel %vm94, %v299, 0
    %302 = vmatpush.msra.mxu0 0.0
    %303 = vmatpush.msra.mxu0 0.0
    %304 = vmatpush.msra.mxu0 0.0
    %305 = vmatpush.msra.mxu0 0.0
    %306 = vmatpush.msra.mxu0 0.0
    %307 = vmatpush.msra.mxu0 0.0
    %308 = vmatpush.msra.mxu0 0.0
    %309 = vmatpush.msra.mxu0 0.0
    %310 = vmatpush.msra.mxu0 0.0
    %311 = vmatpush.msra.mxu0 0.0
    %312 = vmatpush.msra.mxu0 0.0
    %313 = vmatpush.msra.mxu0 0.0
    %314 = vmatpush.msra.mxu0 %v127
    %315 = vmatpush.msra.mxu0 %v126
    %316 = vmatpush.msra.mxu0 %v125
    %317 = vmatpush.msra.mxu0 %v124
    %318 = vmatmul.f32.gmra.mxu0 %v300
    %v319 = vpop.f32.mrf.mxu0
    %v320 = vadd.f32 0.0, %v319
    %321 = vdwg.mxu0
    %v323 = vrot.slane %v320, 5
    %v325 = vadd.f32 %v116, %v323
    %v326 = vmul.f32 %v325, %v123
    %v327 = vtanh.pop %v326
    %v328 = vadd.f32 %v327, 1.0
    %v329 = vmul.f32 %v328, 0.5
    %v330 = vsel %vm122, %v327, %v329
    %v332 = vrot.slane %v284, 7
    %v334 = vmul.f32 %v330, %v332
    %336 = vrot.lane.b32.xlu0 %v330, 64
    %v337 = vpop.permute.xlu0 %336
    %v339 = vmul.f32 %v330, %v337
    %341 = vrot.lane.b32.xlu0 %v339, 32
    %v342 = vpop.permute.xlu0 %341
    %v344 = vadd.f32 %v334, %v342
    %v345 = vtanh.pop %v344
    %347 = vrot.lane.b32.xlu0 %v345, 64
    %v348 = vpop.permute.xlu0 %347
    %v350 = vmul.f32 %v330, %v348
    %352 = vrot.lane.b32.xlu0 %v350, 32
    %v353 = vpop.permute.xlu0 %352
    %vm355 = vcmask 257027
    %356 = vst.msk [vmem:[#allocation2] sm:$0x8] %vm355, %v353
    %v357 = vrot.slane %v350, 3
    %358 = vrot.lane.b32.xlu0 %v357, 32
    %v359 = vpop.permute.xlu0 %358
    %v360 = vsel %vm94, %v359, 0
    %362 = vmatpush.msra.mxu0 0.0
    %363 = vmatpush.msra.mxu0 0.0
    %364 = vmatpush.msra.mxu0 0.0
    %365 = vmatpush.msra.mxu0 0.0
    %366 = vmatpush.msra.mxu0 0.0
    %367 = vmatpush.msra.mxu0 0.0
    %368 = vmatpush.msra.mxu0 0.0
    %369 = vmatpush.msra.mxu0 0.0
    %370 = vmatpush.msra.mxu0 0.0
    %371 = vmatpush.msra.mxu0 0.0
    %372 = vmatpush.msra.mxu0 0.0
    %373 = vmatpush.msra.mxu0 0.0
    %374 = vmatpush.msra.mxu0 %v127
    %375 = vmatpush.msra.mxu0 %v126
    %376 = vmatpush.msra.mxu0 %v125
    %377 = vmatpush.msra.mxu0 %v124
    %378 = vmatmul.f32.gmra.mxu0 %v360
    %v379 = vpop.f32.mrf.mxu0
    %v380 = vadd.f32 0.0, %v379
    %381 = vdwg.mxu0
    %v383 = vrot.slane %v380, 4
    %v385 = vadd.f32 %v116, %v383
    %v386 = vmul.f32 %v385, %v123
    %v387 = vtanh.pop %v386
    %v388 = vadd.f32 %v387, 1.0
    %v389 = vmul.f32 %v388, 0.5
    %v390 = vsel %vm122, %v387, %v389
    %v392 = vrot.slane %v344, 7
    %v394 = vmul.f32 %v390, %v392
    %396 = vrot.lane.b32.xlu0 %v390, 64
    %v397 = vpop.permute.xlu0 %396
    %v399 = vmul.f32 %v390, %v397
    %401 = vrot.lane.b32.xlu0 %v399, 32
    %v402 = vpop.permute.xlu0 %401
    %v404 = vadd.f32 %v394, %v402
    %v405 = vtanh.pop %v404
    %407 = vrot.lane.b32.xlu0 %v405, 64
    %v408 = vpop.permute.xlu0 %407
    %v410 = vmul.f32 %v390, %v408
    %412 = vrot.lane.b32.xlu0 %v410, 32
    %v413 = vpop.permute.xlu0 %412
    %vm415 = vcmask 258052
    %416 = vst.msk [vmem:[#allocation2] sm:$0x10] %vm415, %v413
    %v417 = vrot.slane %v410, 4
    %418 = vrot.lane.b32.xlu0 %v417, 32
    %v419 = vpop.permute.xlu0 %418
    %v420 = vsel %vm94, %v419, 0
    %422 = vmatpush.msra.mxu0 0.0
    %423 = vmatpush.msra.mxu0 0.0
    %424 = vmatpush.msra.mxu0 0.0
    %425 = vmatpush.msra.mxu0 0.0
    %426 = vmatpush.msra.mxu0 0.0
    %427 = vmatpush.msra.mxu0 0.0
    %428 = vmatpush.msra.mxu0 0.0
    %429 = vmatpush.msra.mxu0 0.0
    %430 = vmatpush.msra.mxu0 0.0
    %431 = vmatpush.msra.mxu0 0.0
    %432 = vmatpush.msra.mxu0 0.0
    %433 = vmatpush.msra.mxu0 0.0
    %434 = vmatpush.msra.mxu0 %v127
    %435 = vmatpush.msra.mxu0 %v126
    %436 = vmatpush.msra.mxu0 %v125
    %437 = vmatpush.msra.mxu0 %v124
    %438 = vmatmul.f32.gmra.mxu0 %v420
    %v439 = vpop.f32.mrf.mxu0
    %v440 = vadd.f32 0.0, %v439
    %441 = vdwg.mxu0
    %v443 = vrot.slane %v440, 3
    %v445 = vadd.f32 %v116, %v443
    %v446 = vmul.f32 %v445, %v123
    %v447 = vtanh.pop %v446
    %v448 = vadd.f32 %v447, 1.0
    %v449 = vmul.f32 %v448, 0.5
    %v450 = vsel %vm122, %v447, %v449
    %v452 = vrot.slane %v404, 7
    %v454 = vmul.f32 %v450, %v452
    %456 = vrot.lane.b32.xlu0 %v450, 64
    %v457 = vpop.permute.xlu0 %456
    %v459 = vmul.f32 %v450, %v457
    %461 = vrot.lane.b32.xlu0 %v459, 32
    %v462 = vpop.permute.xlu0 %461
    %v464 = vadd.f32 %v454, %v462
    %v465 = vtanh.pop %v464
    %467 = vrot.lane.b32.xlu0 %v465, 64
    %v468 = vpop.permute.xlu0 %467
    %v470 = vmul.f32 %v450, %v468
    %472 = vrot.lane.b32.xlu0 %v470, 32
    %v473 = vpop.permute.xlu0 %472
    %vm475 = vcmask 259077
    %476 = vst.msk [vmem:[#allocation2] sm:$0x20] %vm475, %v473
    %v477 = vrot.slane %v470, 5
    %478 = vrot.lane.b32.xlu0 %v477, 32
    %v479 = vpop.permute.xlu0 %478
    %v480 = vsel %vm94, %v479, 0
    %482 = vmatpush.msra.mxu0 0.0
    %483 = vmatpush.msra.mxu0 0.0
    %484 = vmatpush.msra.mxu0 0.0
    %485 = vmatpush.msra.mxu0 0.0
    %486 = vmatpush.msra.mxu0 0.0
    %487 = vmatpush.msra.mxu0 0.0
    %488 = vmatpush.msra.mxu0 0.0
    %489 = vmatpush.msra.mxu0 0.0
    %490 = vmatpush.msra.mxu0 0.0
    %491 = vmatpush.msra.mxu0 0.0
    %492 = vmatpush.msra.mxu0 0.0
    %493 = vmatpush.msra.mxu0 0.0
    %494 = vmatpush.msra.mxu0 %v127
    %495 = vmatpush.msra.mxu0 %v126
    %496 = vmatpush.msra.mxu0 %v125
    %497 = vmatpush.msra.mxu0 %v124
    %498 = vmatmul.f32.gmra.mxu0 %v480
    %v499 = vpop.f32.mrf.mxu0
    %v500 = vadd.f32 0.0, %v499
    %501 = vdwg.mxu0
    %v503 = vrot.slane %v500, 2
    %v505 = vadd.f32 %v116, %v503
    %v506 = vmul.f32 %v505, %v123
    %v507 = vtanh.pop %v506
    %v508 = vadd.f32 %v507, 1.0
    %v509 = vmul.f32 %v508, 0.5
    %v510 = vsel %vm122, %v507, %v509
    %v512 = vrot.slane %v464, 7
    %v514 = vmul.f32 %v510, %v512
    %516 = vrot.lane.b32.xlu0 %v510, 64
    %v517 = vpop.permute.xlu0 %516
    %v519 = vmul.f32 %v510, %v517
    %521 = vrot.lane.b32.xlu0 %v519, 32
    %v522 = vpop.permute.xlu0 %521
    %v524 = vadd.f32 %v514, %v522
    %v525 = vtanh.pop %v524
    %527 = vrot.lane.b32.xlu0 %v525, 64
    %v528 = vpop.permute.xlu0 %527
    %v530 = vmul.f32 %v510, %v528
    %532 = vrot.lane.b32.xlu0 %v530, 32
    %v533 = vpop.permute.xlu0 %532
    %vm535 = vcmask 260102
    %536 = vst.msk [vmem:[#allocation2] sm:$0x40] %vm535, %v533
    %v537 = vrot.slane %v530, 6
    %538 = vrot.lane.b32.xlu0 %v537, 32
    %v539 = vpop.permute.xlu0 %538
    %v540 = vsel %vm94, %v539, 0
    %542 = vmatpush.msra.mxu0 0.0
    %543 = vmatpush.msra.mxu0 0.0
    %544 = vmatpush.msra.mxu0 0.0
    %545 = vmatpush.msra.mxu0 0.0
    %546 = vmatpush.msra.mxu0 0.0
    %547 = vmatpush.msra.mxu0 0.0
    %548 = vmatpush.msra.mxu0 0.0
    %549 = vmatpush.msra.mxu0 0.0
    %550 = vmatpush.msra.mxu0 0.0
    %551 = vmatpush.msra.mxu0 0.0
    %552 = vmatpush.msra.mxu0 0.0
    %553 = vmatpush.msra.mxu0 0.0
    %554 = vmatpush.msra.mxu0 %v127
    %555 = vmatpush.msra.mxu0 %v126
    %556 = vmatpush.msra.mxu0 %v125
    %557 = vmatpush.msra.mxu0 %v124
    %558 = vmatmul.f32.gmra.mxu0 %v540
    %v559 = vpop.f32.mrf.mxu0
    %v560 = vadd.f32 0.0, %v559
    %561 = vdwg.mxu0
    %v563 = vrot.slane %v560, 1
    %v565 = vadd.f32 %v116, %v563
    %v566 = vmul.f32 %v565, %v123
    %v567 = vtanh.pop %v566
    %v568 = vadd.f32 %v567, 1.0
    %v569 = vmul.f32 %v568, 0.5
    %v570 = vsel %vm122, %v567, %v569
    %v572 = vrot.slane %v524, 7
    %v574 = vmul.f32 %v570, %v572
    %576 = vrot.lane.b32.xlu0 %v570, 64
    %v577 = vpop.permute.xlu0 %576
    %v579 = vmul.f32 %v570, %v577
    %581 = vrot.lane.b32.xlu0 %v579, 32
    %v582 = vpop.permute.xlu0 %581
    %v584 = vadd.f32 %v574, %v582
    %v585 = vtanh.pop %v584
    %587 = vrot.lane.b32.xlu0 %v585, 64
    %v588 = vpop.permute.xlu0 %587
    %v590 = vmul.f32 %v570, %v588
    %592 = vrot.lane.b32.xlu0 %v590, 32
    %v593 = vpop.permute.xlu0 %592
    %vm595 = vcmask 261127
    %596 = vst.msk [vmem:[#allocation2] sm:$0x80] %vm595, %v593
    %v597 = vld [vmem:[#allocation2] sm:$0xff]
    %v598 = vld [vmem:[#allocation9] sm:$0xff]
    %v599 = vld [vmem:[#allocation9 + $0x8] sm:$0xff]
    %v600 = vld [vmem:[#allocation9 + $0x10] sm:$0xff]
    %v601 = vld [vmem:[#allocation9 + $0x18] sm:$0xff]
    %v602 = vld [vmem:[%s5] sm:$0x1]
    %v604 = vperm.slane %v602, 0
    %v607 = vsel %vm94, %v597, 0
    %609 = vmatpush.msra.mxu0 0.0
    %610 = vmatpush.msra.mxu0 0.0
    %611 = vmatpush.msra.mxu0 0.0
    %612 = vmatpush.msra.mxu0 0.0
    %613 = vmatpush.msra.mxu0 0.0
    %614 = vmatpush.msra.mxu0 0.0
    %615 = vmatpush.msra.mxu0 0.0
    %616 = vmatpush.msra.mxu0 0.0
    %617 = vmatpush.msra.mxu0 0.0
    %618 = vmatpush.msra.mxu0 0.0
    %619 = vmatpush.msra.mxu0 0.0
    %620 = vmatpush.msra.mxu0 0.0
    %621 = vmatpush.msra.mxu0 %v601
    %622 = vmatpush.msra.mxu0 %v600
    %623 = vmatpush.msra.mxu0 %v599
    %624 = vmatpush.msra.mxu0 %v598
    %625 = vmatmul.f32.gmra.mxu0 %v607
    %v626 = vpop.f32.mrf.mxu0
    %v627 = vadd.f32 %v604, %v626
    %628 = vdwg.mxu0
    %629 = vmax.xlane.f32.xlu0 %v627
    %v630 = vpop.xlane.xlu0 %629
    %v631 = vsub.f32 %v627, %v630
    %v632 = vmul.f32 %v631, 1.442695
    %v633 = vpow.pop %v632
    %634 = vadd.xlane.f32.xlu0 %v633
    %v635 = vpop.xlane.xlu0 %634
    %v636 = vlog2.pop %v635
    %v637 = vmul.f32 %v636, 0.6931472
    %v638 = vadd.f32 %v637, %v630
    %v639 = vsub.f32 %v627, %v638
    %640 = vst [vmem:[#allocation11] sm:$0xff] %v639
    // Predicated region
    $region42: #{tpu_custom_call.1} parent=1 // pred_check
      _
    $region43: #{tpu_custom_call.1} parent=1 // pred_check_branch
      %642 = sbr.rel (0) target = $region45
    $region44: #{tpu_custom_call.1} parent=1 // pred_region
      %644 = vsyncadd [#allocation5], 0
      %s646 = sshll.u32 [#allocation11], 4
      %s647 = int_to_ptr.vmem [resolvable:$true] %s646
      %s648 = sshll.u32 %s6, 4
      %s649 = int_to_ptr.hbm [resolvable:$true] %s648
      %651 = dma.vmem_to_hbm [thread:$0]  %s647, 128, %s649, [#allocation5]
    $region45: #{tpu_custom_call.1} parent=1 // pred_fallthru
      _
    // Predicated region
    $region46: #{tpu_custom_call.1} parent=1 // pred_check
      _
    $region47: #{tpu_custom_call.1} parent=1 // pred_check_branch
      %653 = sbr.rel (0) target = $region49
    $region48: #{tpu_custom_call.1} parent=1 // pred_region
      %655 = dma.done [#allocation5], 128
    $region49: #{tpu_custom_call.1} parent=1 // pred_fallthru
      _
    %656 = vsyncpa [#allocation4], 1
    %657 = vsyncpa [#allocation7], 1
    %658 = vsyncpa [#allocation10], 1
    %659 = vsyncpa [#allocation5], 1

</llo_original>
